<compile_context>
chip_gen: v6e
topology: v6e:2x2x1
jax: 0.10.0
libtpu: 0.0.40
codegen_flags: <defaults>
</compile_context>

<pallas_src>
import jax
import jax.numpy as jnp
from jax.experimental import pallas as pl
from jax.experimental.pallas import tpu as pltpu


def _round_up(n, m):
    return ((n + m - 1) // m) * m


def _pad2d(a, rows, cols):
    return jnp.pad(a, ((0, rows - a.shape[0]), (0, cols - a.shape[1])))


def _fused_pruned_mlp_kernel(
    x_ref, w1_ref, m1_ref, b1_ref, w2_ref, m2_ref, b2_ref, o_ref
):
    # Layer 1: apply pruning mask (PrunedModel._apply_mask) + Linear + ReLU.
    # Weights are pre-transposed to [Din, Dh]; masks arrive as int8 and are
    # upcast on the VPU (cost hidden under DMA).
    w1m = w1_ref[...] * m1_ref[...].astype(w1_ref.dtype)
    h = jnp.dot(x_ref[...], w1m, preferred_element_type=jnp.float32)
    h = jnp.maximum(h + b1_ref[...], 0.0)  # hidden never leaves VMEM/vregs

    # Layer 2: apply mask + Linear.
    w2m = w2_ref[...] * m2_ref[...].astype(w2_ref.dtype)
    y = jnp.dot(h, w2m, preferred_element_type=jnp.float32)
    o_ref[...] = (y + b2_ref[...]).astype(o_ref.dtype)


def prepare_pruned_model(params, masks):
    """One-time preparation: pad, transpose, and convert masks to int8.

    params follow the PyTorch nn.Linear layout:
      w1: [Dh, Din], b1: [Dh], w2: [Dout, Dh], b2: [Dout]
    masks mirror the prunable weight shapes with strictly 0/1 entries
    (as enforced by Mask.__setitem__).
    """
    d_hidden, d_in = params["w1"].shape
    d_out = params["w2"].shape[0]

    din_p = _round_up(d_in, 128)
    dh_p = _round_up(d_hidden, 128)
    dout_p = _round_up(d_out, 128)

    prepared = {
        # Pre-transposed, lane-dense weight layouts: [K, N].
        "w1t": _pad2d(params["w1"].T.astype(jnp.float32), din_p, dh_p),
        "m1t": _pad2d(masks["w1"].T.astype(jnp.int8), din_p, dh_p),
        "b1": _pad2d(params["b1"].reshape(1, d_hidden).astype(jnp.float32), 1, dh_p),
        "w2t": _pad2d(params["w2"].T.astype(jnp.float32), dh_p, dout_p),
        "m2t": _pad2d(masks["w2"].T.astype(jnp.int8), dh_p, dout_p),
        "b2": _pad2d(params["b2"].reshape(1, d_out).astype(jnp.float32), 1, dout_p),
        "dims": (d_in, d_hidden, d_out, din_p, dh_p, dout_p),
    }
    return prepared


def pruned_model_forward(x, prepared, *, tm_max=256):
    """Equivalent of PrunedModel.forward for a 2-layer MLP.

    x: [B, Din].  `prepared` comes from prepare_pruned_model (padding and
    layout work hoisted out of the per-call path; only x is padded here).
    """
    batch, d_in = x.shape
    (d_in_p, d_hidden, d_out, din_p, dh_p, dout_p) = prepared["dims"]
    assert d_in == d_in_p

    # Batch tiling: one block if small, otherwise TM-row tiles pipelined
    # over a parallel grid axis (sharded across TensorCores on v7x).
    b_p = _round_up(batch, 8)
    if b_p <= tm_max:
        tm = b_p
    else:
        tm = tm_max
        b_p = _round_up(batch, tm)
    grid = (b_p // tm,)

    x_p = _pad2d(x.astype(jnp.float32), b_p, din_p)

    out_p = pl.pallas_call(
        _fused_pruned_mlp_kernel,
        out_shape=jax.ShapeDtypeStruct((b_p, dout_p), jnp.float32),
        grid=grid,
        in_specs=[
            pl.BlockSpec((tm, din_p), lambda i: (i, 0)),    # x tile (pipelined)
            pl.BlockSpec((din_p, dh_p), lambda i: (0, 0)),  # W1^T   (resident)
            pl.BlockSpec((din_p, dh_p), lambda i: (0, 0)),  # mask1^T int8
            pl.BlockSpec((1, dh_p), lambda i: (0, 0)),      # b1 (lane-dense row)
            pl.BlockSpec((dh_p, dout_p), lambda i: (0, 0)),  # W2^T  (resident)
            pl.BlockSpec((dh_p, dout_p), lambda i: (0, 0)),  # mask2^T int8
            pl.BlockSpec((1, dout_p), lambda i: (0, 0)),     # b2
        ],
        out_specs=pl.BlockSpec((tm, dout_p), lambda i: (i, 0)),
        compiler_params=pltpu.CompilerParams(
            dimension_semantics=("parallel",),
            vmem_limit_bytes=48 * 1024 * 1024,  # within v7x's 64 MiB/TC budget
        ),
    )(x_p, prepared["w1t"], prepared["m1t"], prepared["b1"],
      prepared["w2t"], prepared["m2t"], prepared["b2"])

    # Slice padding back off.
    return out_p[:batch, :d_out]


def _reference_forward(x, params, masks):
    w1 = params["w1"] * masks["w1"]
    w2 = params["w2"] * masks["w2"]
    h = jnp.maximum(x @ w1.T + params["b1"], 0.0)
    return h @ w2.T + params["b2"]


if __name__ == "__main__":
    key = jax.random.PRNGKey(0)
    k_x, k_w1, k_b1, k_w2, k_b2, k_m1, k_m2 = jax.random.split(key, 7)

    batch, d_in, d_hidden, d_out = 8, 32, 64, 16

    x = jax.random.normal(k_x, (batch, d_in), dtype=jnp.float32)

    params = {
        "w1": jax.random.normal(k_w1, (d_hidden, d_in), dtype=jnp.float32) * 0.1,
        "b1": jax.random.normal(k_b1, (d_hidden,), dtype=jnp.float32) * 0.1,
        "w2": jax.random.normal(k_w2, (d_out, d_hidden), dtype=jnp.float32) * 0.1,
        "b2": jax.random.normal(k_b2, (d_out,), dtype=jnp.float32) * 0.1,
    }

    # Pruning masks: strictly 0/1 values (as enforced by Mask.__setitem__),
    # one per prunable (Linear weight) tensor.
    masks = {
        "w1": jax.random.bernoulli(k_m1, 0.5, (d_hidden, d_in)).astype(jnp.float32),
        "w2": jax.random.bernoulli(k_m2, 0.5, (d_out, d_hidden)).astype(jnp.float32),
    }

    # One-time layout/padding/dtype prep (hoisted out of the per-call path).
    prepared = prepare_pruned_model(params, masks)
    prepared = jax.tree_util.tree_map(
        lambda a: jax.block_until_ready(a) if isinstance(a, jax.Array) else a,
        prepared,
    )

    out = pruned_model_forward(x, prepared)
    out = jax.block_until_ready(out)

    ref = _reference_forward(x, params, masks)
    assert out.shape == (batch, d_out)
    assert jnp.allclose(out, ref, atol=1e-5, rtol=1e-5)

    print("KERNEL_OK")
</pallas_src>

<mosaic_0001>
module attributes {stable_mosaic.version = 11 : i64} {
  func.func @_fused_pruned_mlp_kernel(%arg0: i32, %arg1: memref<8x128xf32, #tpu.memory_space<vmem>>, %arg2: memref<128x128xf32, #tpu.memory_space<vmem>>, %arg3: memref<128x128xi8, #tpu.memory_space<vmem>>, %arg4: memref<1x128xf32, #tpu.memory_space<vmem>>, %arg5: memref<128x128xf32, #tpu.memory_space<vmem>>, %arg6: memref<128x128xi8, #tpu.memory_space<vmem>>, %arg7: memref<1x128xf32, #tpu.memory_space<vmem>>, %arg8: memref<8x128xf32, #tpu.memory_space<vmem>>) attributes {dimension_semantics = [#tpu.dimension_semantics<parallel>], iteration_bounds = array<i64: 1>, scalar_prefetch = 0 : i64, scratch_operands = 0 : i64, tpu.core_type = #tpu.core_type<tc>, window_params = [{transform_indices = @transform_0, window_bounds = array<i64: 8, 128>}, {pipeline_mode = #tpu.pipeline_mode<synchronous>, transform_indices = @transform_1, window_bounds = array<i64: 128, 128>}, {pipeline_mode = #tpu.pipeline_mode<synchronous>, transform_indices = @transform_2, window_bounds = array<i64: 128, 128>}, {pipeline_mode = #tpu.pipeline_mode<synchronous>, transform_indices = @transform_3, window_bounds = array<i64: 1, 128>}, {pipeline_mode = #tpu.pipeline_mode<synchronous>, transform_indices = @transform_4, window_bounds = array<i64: 128, 128>}, {pipeline_mode = #tpu.pipeline_mode<synchronous>, transform_indices = @transform_5, window_bounds = array<i64: 128, 128>}, {pipeline_mode = #tpu.pipeline_mode<synchronous>, transform_indices = @transform_6, window_bounds = array<i64: 1, 128>}, {transform_indices = @transform_7, window_bounds = array<i64: 8, 128>}]} {
    %c0 = arith.constant 0 : index
    %c0_0 = arith.constant 0 : index
    %0 = vector.load %arg2[%c0, %c0_0] : memref<128x128xf32, #tpu.memory_space<vmem>>, vector<128x128xf32>
    %c0_1 = arith.constant 0 : index
    %c0_2 = arith.constant 0 : index
    %1 = vector.load %arg3[%c0_1, %c0_2] : memref<128x128xi8, #tpu.memory_space<vmem>>, vector<128x128xi8>
    %2 = arith.sitofp %1 : vector<128x128xi8> to vector<128x128xf32>
    %3 = arith.mulf %0, %2 : vector<128x128xf32>
    %c0_3 = arith.constant 0 : index
    %c0_4 = arith.constant 0 : index
    %4 = vector.load %arg1[%c0_3, %c0_4] : memref<8x128xf32, #tpu.memory_space<vmem>>, vector<8x128xf32>
    %cst = arith.constant dense<0.000000e+00> : vector<8x128xf32>
    %5 = tpu.matmul %4, %3, %cst {dimension_numbers = #tpu.dot_dimension_numbers<[1], [0], [0], [1], [0, 0, 1, 1], [], []>} : vector<8x128xf32>, vector<128x128xf32>, vector<8x128xf32> -> vector<8x128xf32>
    %c0_5 = arith.constant 0 : index
    %c0_6 = arith.constant 0 : index
    %6 = vector.load %arg4[%c0_5, %c0_6] : memref<1x128xf32, #tpu.memory_space<vmem>>, vector<1x128xf32>
    %7 = vector.broadcast %6 : vector<1x128xf32> to vector<8x128xf32>
    %8 = arith.addf %5, %7 : vector<8x128xf32>
    %cst_7 = arith.constant 0.000000e+00 : f32
    %9 = vector.broadcast %cst_7 : f32 to vector<8x128xf32>
    %10 = arith.maximumf %8, %9 : vector<8x128xf32>
    %c0_8 = arith.constant 0 : index
    %c0_9 = arith.constant 0 : index
    %11 = vector.load %arg5[%c0_8, %c0_9] : memref<128x128xf32, #tpu.memory_space<vmem>>, vector<128x128xf32>
    %c0_10 = arith.constant 0 : index
    %c0_11 = arith.constant 0 : index
    %12 = vector.load %arg6[%c0_10, %c0_11] : memref<128x128xi8, #tpu.memory_space<vmem>>, vector<128x128xi8>
    %13 = arith.sitofp %12 : vector<128x128xi8> to vector<128x128xf32>
    %14 = arith.mulf %11, %13 : vector<128x128xf32>
    %cst_12 = arith.constant dense<0.000000e+00> : vector<8x128xf32>
    %15 = tpu.matmul %10, %14, %cst_12 {dimension_numbers = #tpu.dot_dimension_numbers<[1], [0], [0], [1], [0, 0, 1, 1], [], []>} : vector<8x128xf32>, vector<128x128xf32>, vector<8x128xf32> -> vector<8x128xf32>
    %c0_13 = arith.constant 0 : index
    %c0_14 = arith.constant 0 : index
    %16 = vector.load %arg7[%c0_13, %c0_14] : memref<1x128xf32, #tpu.memory_space<vmem>>, vector<1x128xf32>
    %17 = vector.broadcast %16 : vector<1x128xf32> to vector<8x128xf32>
    %18 = arith.addf %15, %17 : vector<8x128xf32>
    %c0_15 = arith.constant 0 : index
    %c0_16 = arith.constant 0 : index
    %19 = vector.load %arg8[%c0_15, %c0_16] : memref<8x128xf32, #tpu.memory_space<vmem>>, vector<8x128xf32>
    tpu.vector_store %arg8[%c0_15, %c0_16], %18 {strides = array<i32>} : memref<8x128xf32, #tpu.memory_space<vmem>>, vector<8x128xf32>,
    return
  }
  func.func @transform_0(%arg0: i32) -> (i32, i32) {
    %c0_i32 = arith.constant 0 : i32
    %c0_i32_0 = arith.constant 0 : i32
    return %arg0, %c0_i32 : i32, i32
  }
  func.func @transform_1(%arg0: i32) -> (i32, i32) {
    %c0_i32 = arith.constant 0 : i32
    %c0_i32_0 = arith.constant 0 : i32
    %c0_i32_1 = arith.constant 0 : i32
    return %c0_i32, %c0_i32_0 : i32, i32
  }
  func.func @transform_2(%arg0: i32) -> (i32, i32) {
    %c0_i32 = arith.constant 0 : i32
    %c0_i32_0 = arith.constant 0 : i32
    %c0_i32_1 = arith.constant 0 : i32
    return %c0_i32, %c0_i32_0 : i32, i32
  }
  func.func @transform_3(%arg0: i32) -> (i32, i32) {
    %c0_i32 = arith.constant 0 : i32
    %c0_i32_0 = arith.constant 0 : i32
    %c0_i32_1 = arith.constant 0 : i32
    return %c0_i32, %c0_i32_0 : i32, i32
  }
  func.func @transform_4(%arg0: i32) -> (i32, i32) {
    %c0_i32 = arith.constant 0 : i32
    %c0_i32_0 = arith.constant 0 : i32
    %c0_i32_1 = arith.constant 0 : i32
    return %c0_i32, %c0_i32_0 : i32, i32
  }
  func.func @transform_5(%arg0: i32) -> (i32, i32) {
    %c0_i32 = arith.constant 0 : i32
    %c0_i32_0 = arith.constant 0 : i32
    %c0_i32_1 = arith.constant 0 : i32
    return %c0_i32, %c0_i32_0 : i32, i32
  }
  func.func @transform_6(%arg0: i32) -> (i32, i32) {
    %c0_i32 = arith.constant 0 : i32
    %c0_i32_0 = arith.constant 0 : i32
    %c0_i32_1 = arith.constant 0 : i32
    return %c0_i32, %c0_i32_0 : i32, i32
  }
  func.func @transform_7(%arg0: i32) -> (i32, i32) {
    %c0_i32 = arith.constant 0 : i32
    %c0_i32_0 = arith.constant 0 : i32
    return %arg0, %c0_i32 : i32, i32
  }
}

</mosaic_0001>

<llo_original>
// kernel: tpu_custom_call.1
$region0: #{tpu_custom_call.1}
  #allocation0 [shape = 'u32[]', space=smem, size = 0x4, offset = 0x4, fixed_abs, tag = 'smem constant byte address 0x4 - core index']
  #allocation1 [shape = 'u32[144,128]{1,0:T(1,128)}', space=vmem, size = 0x12000, scoped, tag = 'internal scratch']
  %s0 = inlined_call_operand.hbm [shape: f32[8,128], index: 0, kind: input, shape index: {}]
  %s1 = inlined_call_operand.hbm [shape: f32[128,128], index: 1, kind: input, shape index: {}]
  %s2 = inlined_call_operand.hbm [shape: s8[128,128], index: 2, kind: input, shape index: {}]
  %s3 = inlined_call_operand.vmem [shape: f32[1,128], index: 3, kind: input, shape index: {}]
  %s4 = inlined_call_operand.hbm [shape: f32[128,128], index: 4, kind: input, shape index: {}]
  %s5 = inlined_call_operand.hbm [shape: s8[128,128], index: 5, kind: input, shape index: {}]
  %s6 = inlined_call_operand.vmem [shape: f32[1,128], index: 6, kind: input, shape index: {}]
  %s7 = inlined_call_operand.hbm [shape: f32[8,128], index: 7, kind: output, shape index: {}]
  %s8 = sld [smem:[#allocation0]]
  $region58: #{tpu_custom_call.1} parent=0
    _
  %s10 = ssub.s32 1, %s8
  %s11 = scalar_select 0, %s10, %s8
  $region1: #{tpu_custom_call.1} parent=0
    #allocation2 [shape = 'u8[4096]{0}', space=vmem, size = 0x1000, scoped, tag = 'input window, operand 0, single buffered']
    #allocation3 [shape = 's32[1]{0}', space=sflag, size = 0x4, scoped, tag = 'scoped memory for tpu_custom_call.1']
    #allocation4 [shape = 's32[1]{0}', space=sflag, size = 0x4, scoped, tag = 'scoped memory for tpu_custom_call.1']
    #allocation5 [shape = 'u8[65536]{0}', space=vmem, size = 0x10000, scoped, tag = 'input window, operand 1, single buffered']
    #allocation6 [shape = 's32[1]{0}', space=sflag, size = 0x4, scoped, tag = 'scoped memory for tpu_custom_call.1']
    #allocation7 [shape = 'u8[16384]{0}', space=vmem, size = 0x4000, scoped, tag = 'input window, operand 2, single buffered']
    #allocation8 [shape = 'u8[65536]{0}', space=vmem, size = 0x10000, scoped, tag = 'input window, operand 4, single buffered']
    #allocation9 [shape = 's32[1]{0}', space=sflag, size = 0x4, scoped, tag = 'scoped memory for tpu_custom_call.1']
    #allocation10 [shape = 'u8[16384]{0}', space=vmem, size = 0x4000, scoped, tag = 'input window, operand 5, single buffered']
    #allocation11 [shape = 'u8[4096]{0}', space=vmem, size = 0x1000, scoped, tag = 'output window, operand 0, single buffered']
    %12 = vsyncpa [#allocation3], 0
    %13 = vsyncpa [#allocation6], 0
    %14 = vsyncpa [#allocation9], 0
    %15 = vsyncpa [#allocation4], 0
    // Predicated region
    $region2: #{tpu_custom_call.1} parent=1 // pred_check
      _
    $region3: #{tpu_custom_call.1} parent=1 // pred_check_branch
      %17 = sbr.rel (0) target = $region5
    $region4: #{tpu_custom_call.1} parent=1 // pred_region
      %s19 = ssub.s32 128, 128
      %20 = vsyncadd [#allocation3], %s19
      %s22 = sshll.u32 [#allocation2], 4
      %s23 = int_to_ptr.vmem [resolvable:$true] %s22
      %25 = dma.hbm_to_vmem [thread:$0]  %s0, 128, %s23, [#allocation3]
    $region5: #{tpu_custom_call.1} parent=1 // pred_fallthru
      _
    // Predicated region
    $region6: #{tpu_custom_call.1} parent=1 // pred_check
      _
    $region7: #{tpu_custom_call.1} parent=1 // pred_check_branch
      %27 = sbr.rel (0) target = $region9
    $region8: #{tpu_custom_call.1} parent=1 // pred_region
      %s29 = ssub.s32 2048, 2048
      %30 = vsyncadd [#allocation6], %s29
      %s31 = sshll.u32 [#allocation5], 4
      %s32 = int_to_ptr.vmem [resolvable:$true] %s31
      %37 = dma.hbm_to_vmem [thread:$0]  %s1, 2048, %s32, [#allocation6], 128, 128, 8
    $region9: #{tpu_custom_call.1} parent=1 // pred_fallthru
      _
    // Predicated region
    $region10: #{tpu_custom_call.1} parent=1 // pred_check
      _
    $region11: #{tpu_custom_call.1} parent=1 // pred_check_branch
      %39 = sbr.rel (0) target = $region13
    $region12: #{tpu_custom_call.1} parent=1 // pred_region
      %s41 = ssub.s32 512, 512
      %42 = vsyncadd [#allocation6], %s41
      %s43 = sshll.u32 [#allocation7], 4
      %s44 = int_to_ptr.vmem [resolvable:$true] %s43
      %49 = dma.hbm_to_vmem [thread:$0]  %s2, 512, %s44, [#allocation6], 128, 128, 8
    $region13: #{tpu_custom_call.1} parent=1 // pred_fallthru
      _
    // Predicated region
    $region14: #{tpu_custom_call.1} parent=1 // pred_check
      _
    $region15: #{tpu_custom_call.1} parent=1 // pred_check_branch
      %51 = sbr.rel (0) target = $region17
    $region16: #{tpu_custom_call.1} parent=1 // pred_region
      _
    $region17: #{tpu_custom_call.1} parent=1 // pred_fallthru
      _
    // Predicated region
    $region18: #{tpu_custom_call.1} parent=1 // pred_check
      _
    $region19: #{tpu_custom_call.1} parent=1 // pred_check_branch
      %53 = sbr.rel (0) target = $region21
    $region20: #{tpu_custom_call.1} parent=1 // pred_region
      %s55 = ssub.s32 2048, 2048
      %56 = vsyncadd [#allocation9], %s55
      %s57 = sshll.u32 [#allocation8], 4
      %s58 = int_to_ptr.vmem [resolvable:$true] %s57
      %63 = dma.hbm_to_vmem [thread:$0]  %s4, 2048, %s58, [#allocation9], 128, 128, 8
    $region21: #{tpu_custom_call.1} parent=1 // pred_fallthru
      _
    // Predicated region
    $region22: #{tpu_custom_call.1} parent=1 // pred_check
      _
    $region23: #{tpu_custom_call.1} parent=1 // pred_check_branch
      %65 = sbr.rel (0) target = $region25
    $region24: #{tpu_custom_call.1} parent=1 // pred_region
      %s67 = ssub.s32 512, 512
      %68 = vsyncadd [#allocation9], %s67
      %s69 = sshll.u32 [#allocation10], 4
      %s70 = int_to_ptr.vmem [resolvable:$true] %s69
      %75 = dma.hbm_to_vmem [thread:$0]  %s5, 512, %s70, [#allocation9], 128, 128, 8
    $region25: #{tpu_custom_call.1} parent=1 // pred_fallthru
      _
    // Predicated region
    $region26: #{tpu_custom_call.1} parent=1 // pred_check
      _
    $region27: #{tpu_custom_call.1} parent=1 // pred_check_branch
      %77 = sbr.rel (0) target = $region29
    $region28: #{tpu_custom_call.1} parent=1 // pred_region
      _
    $region29: #{tpu_custom_call.1} parent=1 // pred_fallthru
      _
    // Predicated region
    $region30: #{tpu_custom_call.1} parent=1 // pred_check
      _
    $region31: #{tpu_custom_call.1} parent=1 // pred_check_branch
      %79 = sbr.rel (0) target = $region33
    $region32: #{tpu_custom_call.1} parent=1 // pred_region
      %80 = dma.done [#allocation3], 128
    $region33: #{tpu_custom_call.1} parent=1 // pred_fallthru
      _
    // Predicated region
    $region34: #{tpu_custom_call.1} parent=1 // pred_check
      _
    $region35: #{tpu_custom_call.1} parent=1 // pred_check_branch
      %82 = sbr.rel (0) target = $region37
    $region36: #{tpu_custom_call.1} parent=1 // pred_region
      %83 = dma.done [#allocation6], 2048
    $region37: #{tpu_custom_call.1} parent=1 // pred_fallthru
      _
    // Predicated region
    $region38: #{tpu_custom_call.1} parent=1 // pred_check
      _
    $region39: #{tpu_custom_call.1} parent=1 // pred_check_branch
      %85 = sbr.rel (0) target = $region41
    $region40: #{tpu_custom_call.1} parent=1 // pred_region
      %86 = dma.done [#allocation6], 512
    $region41: #{tpu_custom_call.1} parent=1 // pred_fallthru
      _
    // Predicated region
    $region42: #{tpu_custom_call.1} parent=1 // pred_check
      _
    $region43: #{tpu_custom_call.1} parent=1 // pred_check_branch
      %88 = sbr.rel (0) target = $region45
    $region44: #{tpu_custom_call.1} parent=1 // pred_region
      %89 = dma.done [#allocation9], 2048
    $region45: #{tpu_custom_call.1} parent=1 // pred_fallthru
      _
    // Predicated region
    $region46: #{tpu_custom_call.1} parent=1 // pred_check
      _
    $region47: #{tpu_custom_call.1} parent=1 // pred_check_branch
      %91 = sbr.rel (0) target = $region49
    $region48: #{tpu_custom_call.1} parent=1 // pred_region
      %92 = dma.done [#allocation9], 512
    $region49: #{tpu_custom_call.1} parent=1 // pred_fallthru
      _
    %v93 = vld [vmem:[#allocation5] sm:$0xff]
    %v94 = vld [vmem:[#allocation5 + $0x8] sm:$0xff]
    %v95 = vld [vmem:[#allocation5 + $0x10] sm:$0xff]
    %v96 = vld [vmem:[#allocation5 + $0x18] sm:$0xff]
    %v97 = vld [vmem:[#allocation5 + $0x20] sm:$0xff]
    %v98 = vld [vmem:[#allocation5 + $0x28] sm:$0xff]
    %v99 = vld [vmem:[#allocation5 + $0x30] sm:$0xff]
    %v100 = vld [vmem:[#allocation5 + $0x38] sm:$0xff]
    %v101 = vld [vmem:[#allocation5 + $0x40] sm:$0xff]
    %v102 = vld [vmem:[#allocation5 + $0x48] sm:$0xff]
    %v103 = vld [vmem:[#allocation5 + $0x50] sm:$0xff]
    %v104 = vld [vmem:[#allocation5 + $0x58] sm:$0xff]
    %v105 = vld [vmem:[#allocation5 + $0x60] sm:$0xff]
    %v106 = vld [vmem:[#allocation5 + $0x68] sm:$0xff]
    %v107 = vld [vmem:[#allocation5 + $0x70] sm:$0xff]
    %v108 = vld [vmem:[#allocation5 + $0x78] sm:$0xff]
    %v109 = vld [vmem:[#allocation7] sm:$0xff]
    %v110 = vld [vmem:[#allocation7 + $0x8] sm:$0xff]
    %v111 = vld [vmem:[#allocation7 + $0x10] sm:$0xff]
    %v112 = vld [vmem:[#allocation7 + $0x18] sm:$0xff]
    %v113 = vunpack.c.0.s8 %v109
    %v114 = vunpack.c.1.s8 %v109
    %v115 = vunpack.c.2.s8 %v109
    %v116 = vunpack.c.3.s8 %v109
    %v117 = vunpack.c.0.s8 %v110
    %v118 = vunpack.c.1.s8 %v110
    %v119 = vunpack.c.2.s8 %v110
    %v120 = vunpack.c.3.s8 %v110
    %v121 = vunpack.c.0.s8 %v111
    %v122 = vunpack.c.1.s8 %v111
    %v123 = vunpack.c.2.s8 %v111
    %v124 = vunpack.c.3.s8 %v111
    %v125 = vunpack.c.0.s8 %v112
    %v126 = vunpack.c.1.s8 %v112
    %v127 = vunpack.c.2.s8 %v112
    %v128 = vunpack.c.3.s8 %v112
    %v129 = vcvt.s32.f32 %v113
    %v130 = vcvt.s32.f32 %v114
    %v131 = vcvt.s32.f32 %v115
    %v132 = vcvt.s32.f32 %v116
    %v133 = vcvt.s32.f32 %v117
    %v134 = vcvt.s32.f32 %v118
    %v135 = vcvt.s32.f32 %v119
    %v136 = vcvt.s32.f32 %v120
    %v137 = vcvt.s32.f32 %v121
    %v138 = vcvt.s32.f32 %v122
    %v139 = vcvt.s32.f32 %v123
    %v140 = vcvt.s32.f32 %v124
    %v141 = vcvt.s32.f32 %v125
    %v142 = vcvt.s32.f32 %v126
    %v143 = vcvt.s32.f32 %v127
    %v144 = vcvt.s32.f32 %v128
    %v145 = vmul.f32 %v93, %v129
    %v146 = vmul.f32 %v94, %v130
    %v147 = vmul.f32 %v95, %v131
    %v148 = vmul.f32 %v96, %v132
    %v149 = vmul.f32 %v97, %v133
    %v150 = vmul.f32 %v98, %v134
    %v151 = vmul.f32 %v99, %v135
    %v152 = vmul.f32 %v100, %v136
    %v153 = vmul.f32 %v101, %v137
    %v154 = vmul.f32 %v102, %v138
    %v155 = vmul.f32 %v103, %v139
    %v156 = vmul.f32 %v104, %v140
    %v157 = vmul.f32 %v105, %v141
    %v158 = vmul.f32 %v106, %v142
    %v159 = vmul.f32 %v107, %v143
    %v160 = vmul.f32 %v108, %v144
    %v161 = vld [vmem:[#allocation2] sm:$0xff]
    %v162 = vld [vmem:[%s3] sm:$0x1]
    %v164 = vlaneseq
    %v165 = vshrl.u32 %v164, 7
    %v166 = vsub.s32 0, %v165
    %v167 = vrot.slane %v162, %v166
    %169 = vmatprep.subr.mxu0 0.0
    %170 = vmatpush1.msra.mxu0 %v160
    %171 = vmatprep.subr.mxu0 0.0
    %172 = vmatpush1.msra.mxu0 %v159
    %173 = vmatprep.subr.mxu0 0.0
    %174 = vmatpush1.msra.mxu0 %v158
    %175 = vmatprep.subr.mxu0 0.0
    %176 = vmatpush1.msra.mxu0 %v157
    %177 = vmatprep.subr.mxu0 0.0
    %178 = vmatpush1.msra.mxu0 %v156
    %179 = vmatprep.subr.mxu0 0.0
    %180 = vmatpush1.msra.mxu0 %v155
    %181 = vmatprep.subr.mxu0 0.0
    %182 = vmatpush1.msra.mxu0 %v154
    %183 = vmatprep.subr.mxu0 0.0
    %184 = vmatpush1.msra.mxu0 %v153
    %185 = vmatprep.subr.mxu0 0.0
    %186 = vmatpush1.msra.mxu0 %v152
    %187 = vmatprep.subr.mxu0 0.0
    %188 = vmatpush1.msra.mxu0 %v151
    %189 = vmatprep.subr.mxu0 0.0
    %190 = vmatpush1.msra.mxu0 %v150
    %191 = vmatprep.subr.mxu0 0.0
    %192 = vmatpush1.msra.mxu0 %v149
    %193 = vmatprep.subr.mxu0 0.0
    %194 = vmatpush1.msra.mxu0 %v148
    %195 = vmatprep.subr.mxu0 0.0
    %196 = vmatpush1.msra.mxu0 %v147
    %197 = vmatprep.subr.mxu0 0.0
    %198 = vmatpush1.msra.mxu0 %v146
    %199 = vmatprep.subr.mxu0 0.0
    %200 = vmatpush1.msra.mxu0 %v145
    %201 = vmatprep.subr.mxu0 0.0
    %202 = vmatpush2.msra.mxu0 0.0
    %203 = vmatprep.subr.mxu0 0.0
    %204 = vmatpush2.msra.mxu0 0.0
    %205 = vmatprep.subr.mxu0 0.0
    %206 = vmatpush2.msra.mxu0 0.0
    %207 = vmatprep.subr.mxu0 0.0
    %208 = vmatpush2.msra.mxu0 0.0
    %209 = vmatprep.subr.mxu0 0.0
    %210 = vmatpush2.msra.mxu0 0.0
    %211 = vmatprep.subr.mxu0 0.0
    %212 = vmatpush2.msra.mxu0 0.0
    %213 = vmatprep.subr.mxu0 0.0
    %214 = vmatpush2.msra.mxu0 0.0
    %215 = vmatprep.subr.mxu0 0.0
    %216 = vmatpush2.msra.mxu0 0.0
    %217 = vmatprep.subr.mxu0 0.0
    %218 = vmatpush2.msra.mxu0 0.0
    %219 = vmatprep.subr.mxu0 0.0
    %220 = vmatpush2.msra.mxu0 0.0
    %221 = vmatprep.subr.mxu0 0.0
    %222 = vmatpush2.msra.mxu0 0.0
    %223 = vmatprep.subr.mxu0 0.0
    %224 = vmatpush2.msra.mxu0 0.0
    %225 = vmatprep.subr.mxu0 0.0
    %226 = vmatpush2.msra.mxu0 0.0
    %227 = vmatprep.subr.mxu0 0.0
    %228 = vmatpush2.msra.mxu0 0.0
    %229 = vmatprep.subr.mxu0 0.0
    %230 = vmatpush2.msra.mxu0 0.0
    %231 = vmatprep.subr.mxu0 0.0
    %232 = vmatpush2.msra.mxu0 0.0
    %233 = vmatprep.mubr.f32.mxu0 0.0
    %234 = vmatmul.mubr.f32.gmra.mxu0 %v161
    %v235 = vpop.f32.mrf.mxu0
    %v236 = vadd.f32 %v167, %v235
    %v237 = vpop.f32.mrf.mxu0
    %238 = vdwg.mxu0
    %v239 = vmax.f32 %v236, 0.0
    %v240 = vld [vmem:[#allocation8] sm:$0xff]
    %v241 = vld [vmem:[#allocation8 + $0x8] sm:$0xff]
    %v242 = vld [vmem:[#allocation8 + $0x10] sm:$0xff]
    %v243 = vld [vmem:[#allocation8 + $0x18] sm:$0xff]
    %v244 = vld [vmem:[#allocation8 + $0x20] sm:$0xff]
    %v245 = vld [vmem:[#allocation8 + $0x28] sm:$0xff]
    %v246 = vld [vmem:[#allocation8 + $0x30] sm:$0xff]
    %v247 = vld [vmem:[#allocation8 + $0x38] sm:$0xff]
    %v248 = vld [vmem:[#allocation8 + $0x40] sm:$0xff]
    %v249 = vld [vmem:[#allocation8 + $0x48] sm:$0xff]
    %v250 = vld [vmem:[#allocation8 + $0x50] sm:$0xff]
    %v251 = vld [vmem:[#allocation8 + $0x58] sm:$0xff]
    %v252 = vld [vmem:[#allocation8 + $0x60] sm:$0xff]
    %v253 = vld [vmem:[#allocation8 + $0x68] sm:$0xff]
    %v254 = vld [vmem:[#allocation8 + $0x70] sm:$0xff]
    %v255 = vld [vmem:[#allocation8 + $0x78] sm:$0xff]
    %v256 = vld [vmem:[#allocation10] sm:$0xff]
    %v257 = vld [vmem:[#allocation10 + $0x8] sm:$0xff]
    %v258 = vld [vmem:[#allocation10 + $0x10] sm:$0xff]
    %v259 = vld [vmem:[#allocation10 + $0x18] sm:$0xff]
    %v260 = vunpack.c.0.s8 %v256
    %v261 = vunpack.c.1.s8 %v256
    %v262 = vunpack.c.2.s8 %v256
    %v263 = vunpack.c.3.s8 %v256
    %v264 = vunpack.c.0.s8 %v257
    %v265 = vunpack.c.1.s8 %v257
    %v266 = vunpack.c.2.s8 %v257
    %v267 = vunpack.c.3.s8 %v257
    %v268 = vunpack.c.0.s8 %v258
    %v269 = vunpack.c.1.s8 %v258
    %v270 = vunpack.c.2.s8 %v258
    %v271 = vunpack.c.3.s8 %v258
    %v272 = vunpack.c.0.s8 %v259
    %v273 = vunpack.c.1.s8 %v259
    %v274 = vunpack.c.2.s8 %v259
    %v275 = vunpack.c.3.s8 %v259
    %v276 = vcvt.s32.f32 %v260
    %v277 = vcvt.s32.f32 %v261
    %v278 = vcvt.s32.f32 %v262
    %v279 = vcvt.s32.f32 %v263
    %v280 = vcvt.s32.f32 %v264
    %v281 = vcvt.s32.f32 %v265
    %v282 = vcvt.s32.f32 %v266
    %v283 = vcvt.s32.f32 %v267
    %v284 = vcvt.s32.f32 %v268
    %v285 = vcvt.s32.f32 %v269
    %v286 = vcvt.s32.f32 %v270
    %v287 = vcvt.s32.f32 %v271
    %v288 = vcvt.s32.f32 %v272
    %v289 = vcvt.s32.f32 %v273
    %v290 = vcvt.s32.f32 %v274
    %v291 = vcvt.s32.f32 %v275
    %v292 = vmul.f32 %v240, %v276
    %v293 = vmul.f32 %v241, %v277
    %v294 = vmul.f32 %v242, %v278
    %v295 = vmul.f32 %v243, %v279
    %v296 = vmul.f32 %v244, %v280
    %v297 = vmul.f32 %v245, %v281
    %v298 = vmul.f32 %v246, %v282
    %v299 = vmul.f32 %v247, %v283
    %v300 = vmul.f32 %v248, %v284
    %v301 = vmul.f32 %v249, %v285
    %v302 = vmul.f32 %v250, %v286
    %v303 = vmul.f32 %v251, %v287
    %v304 = vmul.f32 %v252, %v288
    %v305 = vmul.f32 %v253, %v289
    %v306 = vmul.f32 %v254, %v290
    %v307 = vmul.f32 %v255, %v291
    %v308 = vld [vmem:[%s6] sm:$0x1]
    %v310 = vlaneseq
    %v311 = vshrl.u32 %v310, 7
    %v312 = vsub.s32 0, %v311
    %v313 = vrot.slane %v308, %v312
    %315 = vmatprep.subr.mxu0 0.0
    %316 = vmatpush1.msra.mxu0 %v307
    %317 = vmatprep.subr.mxu0 0.0
    %318 = vmatpush1.msra.mxu0 %v306
    %319 = vmatprep.subr.mxu0 0.0
    %320 = vmatpush1.msra.mxu0 %v305
    %321 = vmatprep.subr.mxu0 0.0
    %322 = vmatpush1.msra.mxu0 %v304
    %323 = vmatprep.subr.mxu0 0.0
    %324 = vmatpush1.msra.mxu0 %v303
    %325 = vmatprep.subr.mxu0 0.0
    %326 = vmatpush1.msra.mxu0 %v302
    %327 = vmatprep.subr.mxu0 0.0
    %328 = vmatpush1.msra.mxu0 %v301
    %329 = vmatprep.subr.mxu0 0.0
    %330 = vmatpush1.msra.mxu0 %v300
    %331 = vmatprep.subr.mxu0 0.0
    %332 = vmatpush1.msra.mxu0 %v299
    %333 = vmatprep.subr.mxu0 0.0
    %334 = vmatpush1.msra.mxu0 %v298
    %335 = vmatprep.subr.mxu0 0.0
    %336 = vmatpush1.msra.mxu0 %v297
    %337 = vmatprep.subr.mxu0 0.0
    %338 = vmatpush1.msra.mxu0 %v296
    %339 = vmatprep.subr.mxu0 0.0
    %340 = vmatpush1.msra.mxu0 %v295
    %341 = vmatprep.subr.mxu0 0.0
    %342 = vmatpush1.msra.mxu0 %v294
    %343 = vmatprep.subr.mxu0 0.0
    %344 = vmatpush1.msra.mxu0 %v293
    %345 = vmatprep.subr.mxu0 0.0
    %346 = vmatpush1.msra.mxu0 %v292
    %347 = vmatprep.subr.mxu0 0.0
    %348 = vmatpush2.msra.mxu0 0.0
    %349 = vmatprep.subr.mxu0 0.0
    %350 = vmatpush2.msra.mxu0 0.0
    %351 = vmatprep.subr.mxu0 0.0
    %352 = vmatpush2.msra.mxu0 0.0
    %353 = vmatprep.subr.mxu0 0.0
    %354 = vmatpush2.msra.mxu0 0.0
    %355 = vmatprep.subr.mxu0 0.0
    %356 = vmatpush2.msra.mxu0 0.0
    %357 = vmatprep.subr.mxu0 0.0
    %358 = vmatpush2.msra.mxu0 0.0
    %359 = vmatprep.subr.mxu0 0.0
    %360 = vmatpush2.msra.mxu0 0.0
    %361 = vmatprep.subr.mxu0 0.0
    %362 = vmatpush2.msra.mxu0 0.0
    %363 = vmatprep.subr.mxu0 0.0
    %364 = vmatpush2.msra.mxu0 0.0
    %365 = vmatprep.subr.mxu0 0.0
    %366 = vmatpush2.msra.mxu0 0.0
    %367 = vmatprep.subr.mxu0 0.0
    %368 = vmatpush2.msra.mxu0 0.0
    %369 = vmatprep.subr.mxu0 0.0
    %370 = vmatpush2.msra.mxu0 0.0
    %371 = vmatprep.subr.mxu0 0.0
    %372 = vmatpush2.msra.mxu0 0.0
    %373 = vmatprep.subr.mxu0 0.0
    %374 = vmatpush2.msra.mxu0 0.0
    %375 = vmatprep.subr.mxu0 0.0
    %376 = vmatpush2.msra.mxu0 0.0
    %377 = vmatprep.subr.mxu0 0.0
    %378 = vmatpush2.msra.mxu0 0.0
    %379 = vmatprep.mubr.f32.mxu0 0.0
    %380 = vmatmul.mubr.f32.gmra.mxu0 %v239
    %v381 = vpop.f32.mrf.mxu0
    %v382 = vadd.f32 %v313, %v381
    %v383 = vpop.f32.mrf.mxu0
    %384 = vdwg.mxu0
    %385 = vst [vmem:[#allocation11] sm:$0xff] %v382
    // Predicated region
    $region50: #{tpu_custom_call.1} parent=1 // pred_check
      _
    $region51: #{tpu_custom_call.1} parent=1 // pred_check_branch
      %387 = sbr.rel (0) target = $region53
    $region52: #{tpu_custom_call.1} parent=1 // pred_region
      %s389 = ssub.s32 128, 128
      %390 = vsyncadd [#allocation4], %s389
      %s392 = sshll.u32 [#allocation11], 4
      %s393 = int_to_ptr.vmem [resolvable:$true] %s392
      %395 = dma.vmem_to_hbm [thread:$0]  %s393, 128, %s7, [#allocation4]
    $region53: #{tpu_custom_call.1} parent=1 // pred_fallthru
      _
    // Predicated region
    $region54: #{tpu_custom_call.1} parent=1 // pred_check
      _
    $region55: #{tpu_custom_call.1} parent=1 // pred_check_branch
      %397 = sbr.rel (0) target = $region57
    $region56: #{tpu_custom_call.1} parent=1 // pred_region
      %398 = dma.done [#allocation4], 128
    $region57: #{tpu_custom_call.1} parent=1 // pred_fallthru
      _
    %399 = vsyncpa [#allocation3], 1
    %400 = vsyncpa [#allocation6], 1
    %401 = vsyncpa [#allocation9], 1
    %402 = vsyncpa [#allocation4], 1

</llo_original>
